<compile_context>
chip_gen: v6e
topology: v6e:2x2x1
jax: 0.10.0
libtpu: 0.0.40
codegen_flags: <defaults>
</compile_context>

<pallas_src>
import functools

import jax
import jax.numpy as jnp
from jax import lax
from jax.experimental import pallas as pl
from jax.experimental.pallas import tpu as pltpu

TEMPERATURE = 0.2
_EPS = 1e-8        # torch cosine_similarity clamp on the norm product
_NORM_EPS = 1e-4   # per-row clamp (sqrt(1e-8)); equals torch unless a row norm < 1e-4
_NEG_BIG = -1e30   # effectively -inf for masked (padded) queue rows (f32 only)


def _round_up(x, m):
    return ((x + m - 1) // m) * m


def _make_kernel(k_rem):
    """Kernel factory.  k_rem = K % tile_k (0 => no padded queue rows)."""
    mask_last = k_rem != 0

    def kernel(lpos_ref, qt_ref, queue_ref, o_ref, m_sc, l_sc):
        ki = pl.program_id(1)
        last = pl.num_programs(1) - 1

        # ---- k == 0: seed the online logsumexp with the positive logit -----
        @pl.when(ki == 0)
        def _init():
            m_sc[...] = lpos_ref[...]                       # (1, TN) f32
            l_sc[...] = jnp.ones_like(lpos_ref[...])        # exp(l_pos - m) = 1

        # ---- every k step: one queue tile ----------------------------------
        # bf16 operands, f32 accumulation on the MXU:
        #   (TK, D) @ (D, TN) -> (TK, TN)
        l_neg = jnp.dot(queue_ref[...], qt_ref[...],
                        preferred_element_type=jnp.float32)

        def update(neg):
            m_prev = m_sc[...]
            m_new = jnp.maximum(m_prev, jnp.max(neg, axis=0, keepdims=True))
            l_sc[...] = (jnp.exp(m_prev - m_new) * l_sc[...]
                         + jnp.sum(jnp.exp(neg - m_new), axis=0, keepdims=True))
            m_sc[...] = m_new

        if mask_last:
            # Only the last K tile carries padded rows; keep the iota/select
            # off the steady-state path.
            @pl.when(ki != last)
            def _steady():
                update(l_neg)

            @pl.when(ki == last)
            def _tail():
                row = lax.broadcasted_iota(jnp.int32, l_neg.shape, 0)
                update(jnp.where(row < k_rem, l_neg, _NEG_BIG))
        else:
            update(l_neg)

        # ---- last k step: emit per-row loss (lane-dense) -------------------
        @pl.when(ki == last)
        def _fin():
            o_ref[...] = m_sc[...] + jnp.log(l_sc[...]) - lpos_ref[...]

    return kernel


@functools.partial(jax.jit, static_argnames=("temperature", "tile_n", "tile_k"))
def infonce_loss(query, keys, queue, temperature=TEMPERATURE,
                 tile_n=None, tile_k=None):
    """query: (N, D), keys: (N, D), queue: (K, D) -> scalar f32 loss."""
    N, D = query.shape
    K, Dq = queue.shape
    assert Dq == D and keys.shape == (N, D)
    inv_t = 1.0 / temperature

    q32 = query.astype(jnp.float32)
    k32 = keys.astype(jnp.float32)
    u32 = queue.astype(jnp.float32)

    qn = jnp.sqrt(jnp.sum(q32 * q32, axis=-1, keepdims=True))   # (N, 1)
    kn = jnp.sqrt(jnp.sum(k32 * k32, axis=-1, keepdims=True))   # (N, 1)
    un = jnp.sqrt(jnp.sum(u32 * u32, axis=-1, keepdims=True))   # (K, 1)

    # Positive logit: exact torch cosine_similarity semantics (product clamp).
    l_pos = (jnp.sum(q32 * k32, axis=-1, keepdims=True)
             / jnp.maximum(qn * kn, _EPS)) * inv_t               # (N, 1) f32

    # Hoisted out of the (N-tiles x K-tiles) loop: pre-scaled query rows
    # (fold in 1/T) and pre-normalized queue rows, downcast once to bf16.
    q_scaled = (q32 / jnp.maximum(qn, _NORM_EPS)) * inv_t
    u_hat = u32 / jnp.maximum(un, _NORM_EPS)

    # ---- tile-size heuristics (D- and VMEM-aware) ---------------------------
    d_pad = _round_up(D, 128)            # zero-padding D changes no dot product

    if tile_n is None:
        tile_n = min(512, _round_up(N, 128))
        # Prefer >= 2 N tiles so the "parallel" grid axis can span both
        # TensorCores (v7x megacore); only possible when N spans > 128 rows.
        if _round_up(N, 128) == tile_n and tile_n > 128:
            tile_n = _round_up(tile_n // 2, 128)
    else:
        tile_n = _round_up(tile_n, 128)

    if tile_k is None:
        # Double-buffered bf16 queue tiles must fit a modest VMEM budget.
        queue_budget = 12 * 1024 * 1024
        tk = max(128, (queue_budget // (2 * d_pad * 2)) // 128 * 128)
        tile_k = min(tk, 8192, _round_up(K, 128))
    else:
        tile_k = _round_up(tile_k, 128)

    n_pad = _round_up(N, tile_n)
    k_pad = _round_up(K, tile_k)
    k_rem = K % tile_k                   # valid rows of the last K tile (0 = full)

    # ---- padded, lane-dense operands ----------------------------------------
    # q^T: (d_pad, n_pad) bf16, queue: (k_pad, d_pad) bf16, l_pos: (1, n_pad) f32
    qt = jnp.zeros((d_pad, n_pad), jnp.bfloat16).at[:D, :N].set(
        q_scaled.T.astype(jnp.bfloat16))
    uq = jnp.zeros((k_pad, d_pad), jnp.bfloat16).at[:K, :D].set(
        u_hat.astype(jnp.bfloat16))
    lp = jnp.zeros((1, n_pad), jnp.float32).at[0, :N].set(l_pos[:, 0])

    grid = (n_pad // tile_n, k_pad // tile_k)

    vmem_bytes = (2 * tile_k * d_pad * 2      # queue double buffer (bf16)
                  + 2 * tile_n * d_pad * 2    # q^T double buffer (bf16)
                  + 8 * tile_n * 4            # l_pos/out/scratch (f32)
                  + (1 << 20))
    vmem_limit = int(min(max(2 * vmem_bytes, 16 << 20), 40 << 20))

    losses = pl.pallas_call(
        _make_kernel(k_rem),
        out_shape=jax.ShapeDtypeStruct((1, n_pad), jnp.float32),
        grid_spec=pltpu.PrefetchScalarGridSpec(
            num_scalar_prefetch=0,
            grid=grid,
            in_specs=[
                pl.BlockSpec((1, tile_n), lambda i, k: (0, i)),        # l_pos
                pl.BlockSpec((d_pad, tile_n), lambda i, k: (0, i)),    # q^T
                pl.BlockSpec((tile_k, d_pad), lambda i, k: (k, 0)),    # queue
            ],
            out_specs=pl.BlockSpec((1, tile_n), lambda i, k: (0, i)),
            scratch_shapes=[
                pltpu.VMEM((1, tile_n), jnp.float32),   # running max m
                pltpu.VMEM((1, tile_n), jnp.float32),   # running rescaled sum l
            ],
        ),
        compiler_params=pltpu.CompilerParams(
            dimension_semantics=("parallel", "arbitrary"),
            vmem_limit_bytes=vmem_limit,
        ),
    )(lp, qt, uq)

    # Final mean over the real (un-padded) rows in the JAX wrapper.
    return jnp.mean(losses[0, :N])


def _infonce_ref(query, keys, queue, temperature=TEMPERATURE):
    """Pure-JAX reference for verification (matches the torch module)."""
    q = query.astype(jnp.float32)
    k = keys.astype(jnp.float32)
    qu = queue.astype(jnp.float32)
    qn = jnp.linalg.norm(q, axis=-1, keepdims=True)
    kn = jnp.linalg.norm(k, axis=-1, keepdims=True)
    qun = jnp.linalg.norm(qu, axis=-1, keepdims=True)
    l_pos = (jnp.sum(q * k, -1, keepdims=True)
             / jnp.maximum(qn * kn, _EPS) / temperature)
    l_neg = (q @ qu.T) / jnp.maximum(qn * qun.T, _EPS) / temperature
    logits = jnp.concatenate([l_pos, l_neg], axis=1)
    lse = jax.scipy.special.logsumexp(logits, axis=1)
    return jnp.mean(lse - logits[:, 0])


if __name__ == "__main__":
    key = jax.random.PRNGKey(0)
    keys_ = jax.random.split(key, 9)

    # Case 1: small shapes implied by the module.
    N, D, K = 8, 32, 16
    query = jax.random.normal(keys_[0], (N, D), dtype=jnp.float32)
    keyv = jax.random.normal(keys_[1], (N, D), dtype=jnp.float32)
    queue = jax.random.normal(keys_[2], (K, D), dtype=jnp.float32)
    loss = infonce_loss(query, keyv, queue)
    jax.block_until_ready(loss)
    ref = _infonce_ref(query, keyv, queue)
    assert jnp.allclose(loss, ref, rtol=1e-2, atol=1e-2), (loss, ref)

    # Case 2: multiple K tiles -> exercises online LSE + last-tile masking.
    N2, D2, K2 = 16, 48, 300
    query2 = jax.random.normal(keys_[3], (N2, D2), dtype=jnp.float32)
    keyv2 = jax.random.normal(keys_[4], (N2, D2), dtype=jnp.float32)
    queue2 = jax.random.normal(keys_[5], (K2, D2), dtype=jnp.float32)
    loss2 = infonce_loss(query2, keyv2, queue2, tile_k=128)
    jax.block_until_ready(loss2)
    ref2 = _infonce_ref(query2, keyv2, queue2)
    assert jnp.allclose(loss2, ref2, rtol=1e-2, atol=1e-2), (loss2, ref2)

    # Case 3: multiple N tiles (parallel axis) + multiple K tiles + padding.
    N3, D3, K3 = 300, 64, 520
    query3 = jax.random.normal(keys_[6], (N3, D3), dtype=jnp.float32)
    keyv3 = jax.random.normal(keys_[7], (N3, D3), dtype=jnp.float32)
    queue3 = jax.random.normal(keys_[8], (K3, D3), dtype=jnp.float32)
    loss3 = infonce_loss(query3, keyv3, queue3, tile_k=256)
    jax.block_until_ready(loss3)
    ref3 = _infonce_ref(query3, keyv3, queue3)
    assert jnp.allclose(loss3, ref3, rtol=1e-2, atol=1e-2), (loss3, ref3)

    print("KERNEL_OK")
</pallas_src>

<mosaic_0001>
module attributes {stable_mosaic.version = 11 : i64} {
  func.func @kernel(%arg0: i32, %arg1: i32, %arg2: memref<1x128xf32, #tpu.memory_space<vmem>>, %arg3: memref<128x128xbf16, #tpu.memory_space<vmem>>, %arg4: memref<128x128xbf16, #tpu.memory_space<vmem>>, %arg5: memref<1x128xf32, #tpu.memory_space<vmem>>, %arg6: memref<1x128xf32, #tpu.memory_space<vmem>>, %arg7: memref<1x128xf32, #tpu.memory_space<vmem>>) attributes {dimension_semantics = [#tpu.dimension_semantics<parallel>, #tpu.dimension_semantics<arbitrary>], iteration_bounds = array<i64: 1, 1>, scalar_prefetch = 0 : i64, scratch_operands = 2 : i64, tpu.core_type = #tpu.core_type<tc>, window_params = [{transform_indices = @transform_0, window_bounds = array<i64: 1, 128>}, {transform_indices = @transform_1, window_bounds = array<i64: 128, 128>}, {transform_indices = @transform_2, window_bounds = array<i64: 128, 128>}, {transform_indices = @transform_3, window_bounds = array<i64: 1, 128>}]} {
    %c0_i32 = arith.constant 0 : i32
    %0 = arith.cmpi eq, %arg1, %c0_i32 : i32
    %1 = arith.extui %0 : i1 to i32
    %c0_i32_0 = arith.constant 0 : i32
    %2 = arith.cmpi ne, %1, %c0_i32_0 : i32
    scf.if %2 {
      %c0_10 = arith.constant 0 : index
      %c0_11 = arith.constant 0 : index
      %15 = vector.load %arg2[%c0_10, %c0_11] : memref<1x128xf32, #tpu.memory_space<vmem>>, vector<1x128xf32>
      %c0_12 = arith.constant 0 : index
      %c0_13 = arith.constant 0 : index
      %16 = vector.load %arg6[%c0_12, %c0_13] : memref<1x128xf32, #tpu.memory_space<vmem>>, vector<1x128xf32>
      tpu.vector_store %arg6[%c0_12, %c0_13], %15 {strides = array<i32>} : memref<1x128xf32, #tpu.memory_space<vmem>>, vector<1x128xf32>,
      %cst_14 = arith.constant 1.000000e+00 : f32
      %17 = vector.broadcast %cst_14 : f32 to vector<1x128xf32>
      %c0_15 = arith.constant 0 : index
      %c0_16 = arith.constant 0 : index
      %18 = vector.load %arg7[%c0_15, %c0_16] : memref<1x128xf32, #tpu.memory_space<vmem>>, vector<1x128xf32>
      tpu.vector_store %arg7[%c0_15, %c0_16], %17 {strides = array<i32>} : memref<1x128xf32, #tpu.memory_space<vmem>>, vector<1x128xf32>,
    } else {
    }
    %c0 = arith.constant 0 : index
    %c0_1 = arith.constant 0 : index
    %3 = vector.load %arg4[%c0, %c0_1] : memref<128x128xbf16, #tpu.memory_space<vmem>>, vector<128x128xbf16>
    %c0_2 = arith.constant 0 : index
    %c0_3 = arith.constant 0 : index
    %4 = vector.load %arg3[%c0_2, %c0_3] : memref<128x128xbf16, #tpu.memory_space<vmem>>, vector<128x128xbf16>
    %cst = arith.constant dense<0.000000e+00> : vector<128x128xf32>
    %5 = tpu.matmul %3, %4, %cst {dimension_numbers = #tpu.dot_dimension_numbers<[1], [0], [0], [1], [0, 0, 1, 1], [], []>} : vector<128x128xbf16>, vector<128x128xbf16>, vector<128x128xf32> -> vector<128x128xf32>
    %c0_i32_4 = arith.constant 0 : i32
    %6 = arith.cmpi ne, %arg1, %c0_i32_4 : i32
    %7 = arith.extui %6 : i1 to i32
    %c0_i32_5 = arith.constant 0 : i32
    %8 = arith.cmpi ne, %7, %c0_i32_5 : i32
    scf.if %8 {
      %c0_10 = arith.constant 0 : index
      %c0_11 = arith.constant 0 : index
      %15 = vector.load %arg6[%c0_10, %c0_11] : memref<1x128xf32, #tpu.memory_space<vmem>>, vector<1x128xf32>
      %cst_12 = arith.constant dense<0xFF800000> : vector<128xf32>
      %16 = vector.multi_reduction <maximumf>, %5, %cst_12 [0] : vector<128x128xf32> to vector<128xf32>
      %17 = vector.shape_cast %16 : vector<128xf32> to vector<1x128xf32>
      %18 = arith.maximumf %15, %17 : vector<1x128xf32>
      %19 = arith.subf %15, %18 : vector<1x128xf32>
      %20 = math.exp %19 : vector<1x128xf32>
      %c0_13 = arith.constant 0 : index
      %c0_14 = arith.constant 0 : index
      %21 = vector.load %arg7[%c0_13, %c0_14] : memref<1x128xf32, #tpu.memory_space<vmem>>, vector<1x128xf32>
      %22 = arith.mulf %20, %21 : vector<1x128xf32>
      %23 = vector.broadcast %18 : vector<1x128xf32> to vector<128x128xf32>
      %24 = arith.subf %5, %23 : vector<128x128xf32>
      %25 = math.exp %24 : vector<128x128xf32>
      %cst_15 = arith.constant dense<0.000000e+00> : vector<128xf32>
      %26 = vector.multi_reduction <add>, %25, %cst_15 [0] : vector<128x128xf32> to vector<128xf32>
      %27 = vector.shape_cast %26 : vector<128xf32> to vector<1x128xf32>
      %28 = arith.addf %22, %27 : vector<1x128xf32>
      %c0_16 = arith.constant 0 : index
      %c0_17 = arith.constant 0 : index
      %29 = vector.load %arg7[%c0_16, %c0_17] : memref<1x128xf32, #tpu.memory_space<vmem>>, vector<1x128xf32>
      tpu.vector_store %arg7[%c0_16, %c0_17], %28 {strides = array<i32>} : memref<1x128xf32, #tpu.memory_space<vmem>>, vector<1x128xf32>,
      %c0_18 = arith.constant 0 : index
      %c0_19 = arith.constant 0 : index
      %30 = vector.load %arg6[%c0_18, %c0_19] : memref<1x128xf32, #tpu.memory_space<vmem>>, vector<1x128xf32>
      tpu.vector_store %arg6[%c0_18, %c0_19], %18 {strides = array<i32>} : memref<1x128xf32, #tpu.memory_space<vmem>>, vector<1x128xf32>,
    } else {
    }
    %c0_i32_6 = arith.constant 0 : i32
    %9 = arith.cmpi eq, %arg1, %c0_i32_6 : i32
    %10 = arith.extui %9 : i1 to i32
    %c0_i32_7 = arith.constant 0 : i32
    %11 = arith.cmpi ne, %10, %c0_i32_7 : i32
    scf.if %11 {
      %15 = tpu.iota {dimensions = array<i32: 0>} : vector<128x128xi32>
      %c16_i32 = arith.constant 16 : i32
      %16 = vector.broadcast %c16_i32 : i32 to vector<128x128xi32>
      %17 = arith.cmpi slt, %15, %16 : vector<128x128xi32>
      %cst_10 = arith.constant -1.000000e+30 : f32
      %18 = vector.broadcast %cst_10 : f32 to vector<128x128xf32>
      %19 = arith.select %17, %5, %18 : vector<128x128xi1>, vector<128x128xf32>
      %c0_11 = arith.constant 0 : index
      %c0_12 = arith.constant 0 : index
      %20 = vector.load %arg6[%c0_11, %c0_12] : memref<1x128xf32, #tpu.memory_space<vmem>>, vector<1x128xf32>
      %cst_13 = arith.constant dense<0xFF800000> : vector<128xf32>
      %21 = vector.multi_reduction <maximumf>, %19, %cst_13 [0] : vector<128x128xf32> to vector<128xf32>
      %22 = vector.shape_cast %21 : vector<128xf32> to vector<1x128xf32>
      %23 = arith.maximumf %20, %22 : vector<1x128xf32>
      %24 = arith.subf %20, %23 : vector<1x128xf32>
      %25 = math.exp %24 : vector<1x128xf32>
      %c0_14 = arith.constant 0 : index
      %c0_15 = arith.constant 0 : index
      %26 = vector.load %arg7[%c0_14, %c0_15] : memref<1x128xf32, #tpu.memory_space<vmem>>, vector<1x128xf32>
      %27 = arith.mulf %25, %26 : vector<1x128xf32>
      %28 = vector.broadcast %23 : vector<1x128xf32> to vector<128x128xf32>
      %29 = arith.subf %19, %28 : vector<128x128xf32>
      %30 = math.exp %29 : vector<128x128xf32>
      %cst_16 = arith.constant dense<0.000000e+00> : vector<128xf32>
      %31 = vector.multi_reduction <add>, %30, %cst_16 [0] : vector<128x128xf32> to vector<128xf32>
      %32 = vector.shape_cast %31 : vector<128xf32> to vector<1x128xf32>
      %33 = arith.addf %27, %32 : vector<1x128xf32>
      %c0_17 = arith.constant 0 : index
      %c0_18 = arith.constant 0 : index
      %34 = vector.load %arg7[%c0_17, %c0_18] : memref<1x128xf32, #tpu.memory_space<vmem>>, vector<1x128xf32>
      tpu.vector_store %arg7[%c0_17, %c0_18], %33 {strides = array<i32>} : memref<1x128xf32, #tpu.memory_space<vmem>>, vector<1x128xf32>,
      %c0_19 = arith.constant 0 : index
      %c0_20 = arith.constant 0 : index
      %35 = vector.load %arg6[%c0_19, %c0_20] : memref<1x128xf32, #tpu.memory_space<vmem>>, vector<1x128xf32>
      tpu.vector_store %arg6[%c0_19, %c0_20], %23 {strides = array<i32>} : memref<1x128xf32, #tpu.memory_space<vmem>>, vector<1x128xf32>,
    } else {
    }
    %c0_i32_8 = arith.constant 0 : i32
    %12 = arith.cmpi eq, %arg1, %c0_i32_8 : i32
    %13 = arith.extui %12 : i1 to i32
    %c0_i32_9 = arith.constant 0 : i32
    %14 = arith.cmpi ne, %13, %c0_i32_9 : i32
    scf.if %14 {
      %c0_10 = arith.constant 0 : index
      %c0_11 = arith.constant 0 : index
      %15 = vector.load %arg6[%c0_10, %c0_11] : memref<1x128xf32, #tpu.memory_space<vmem>>, vector<1x128xf32>
      %c0_12 = arith.constant 0 : index
      %c0_13 = arith.constant 0 : index
      %16 = vector.load %arg7[%c0_12, %c0_13] : memref<1x128xf32, #tpu.memory_space<vmem>>, vector<1x128xf32>
      %17 = math.log %16 : vector<1x128xf32>
      %18 = arith.addf %15, %17 : vector<1x128xf32>
      %c0_14 = arith.constant 0 : index
      %c0_15 = arith.constant 0 : index
      %19 = vector.load %arg2[%c0_14, %c0_15] : memref<1x128xf32, #tpu.memory_space<vmem>>, vector<1x128xf32>
      %20 = arith.subf %18, %19 : vector<1x128xf32>
      %c0_16 = arith.constant 0 : index
      %c0_17 = arith.constant 0 : index
      %21 = vector.load %arg5[%c0_16, %c0_17] : memref<1x128xf32, #tpu.memory_space<vmem>>, vector<1x128xf32>
      tpu.vector_store %arg5[%c0_16, %c0_17], %20 {strides = array<i32>} : memref<1x128xf32, #tpu.memory_space<vmem>>, vector<1x128xf32>,
    } else {
    }
    return
  }
  func.func @transform_0(%arg0: i32, %arg1: i32) -> (i32, i32) {
    %c0_i32 = arith.constant 0 : i32
    %c0_i32_0 = arith.constant 0 : i32
    return %c0_i32, %arg0 : i32, i32
  }
  func.func @transform_1(%arg0: i32, %arg1: i32) -> (i32, i32) {
    %c0_i32 = arith.constant 0 : i32
    %c0_i32_0 = arith.constant 0 : i32
    return %c0_i32, %arg0 : i32, i32
  }
  func.func @transform_2(%arg0: i32, %arg1: i32) -> (i32, i32) {
    %c0_i32 = arith.constant 0 : i32
    %c0_i32_0 = arith.constant 0 : i32
    return %arg1, %c0_i32 : i32, i32
  }
  func.func @transform_3(%arg0: i32, %arg1: i32) -> (i32, i32) {
    %c0_i32 = arith.constant 0 : i32
    %c0_i32_0 = arith.constant 0 : i32
    return %c0_i32, %arg0 : i32, i32
  }
}

</mosaic_0001>

<llo_original>
// kernel: infonce_loss.1
$region0: #{infonce_loss.1}
  #allocation0 [shape = 'u32[]', space=smem, size = 0x4, offset = 0x4, fixed_abs, tag = 'smem constant byte address 0x4 - core index']
  #allocation1 [shape = 'u32[144,128]{1,0:T(1,128)}', space=vmem, size = 0x12000, scoped, tag = 'internal scratch']
  #allocation2 [shape = 'f32[1,128]{1,0:T(1,128)}', space=vmem, size = 0x200, scoped, tag = 'scratch operand']
  #allocation3 [shape = 'f32[1,128]{1,0:T(1,128)}', space=vmem, size = 0x200, scoped, tag = 'scratch operand']
  %s0 = inlined_call_operand.vmem [shape: f32[1,128], index: 0, kind: input, shape index: {}]
  %s1 = inlined_call_operand.vmem [shape: bf16[128,128], index: 1, kind: input, shape index: {}]
  %s2 = inlined_call_operand.vmem [shape: bf16[128,128], index: 2, kind: input, shape index: {}]
  %s3 = inlined_call_operand.vmem [shape: f32[1,128], index: 3, kind: output, shape index: {}]
  %s4 = sld [smem:[#allocation0]]
  $region34: #{infonce_loss.1} parent=0
    _
  %s6 = ssub.s32 1, %s4
  %s7 = scalar_select 0, %s6, %s4
  // Predicated region
  $region2: #{infonce_loss.1} parent=0 // pred_check
    _
  $region3: #{infonce_loss.1} parent=0 // pred_check_branch
    %9 = sbr.rel (0) target = $region5
  $region4: #{infonce_loss.1} parent=0 // pred_region
    _
  $region5: #{infonce_loss.1} parent=0 // pred_fallthru
    _
  // Predicated region
  $region6: #{infonce_loss.1} parent=0 // pred_check
    _
  $region7: #{infonce_loss.1} parent=0 // pred_check_branch
    %11 = sbr.rel (0) target = $region9
  $region8: #{infonce_loss.1} parent=0 // pred_region
    _
  $region9: #{infonce_loss.1} parent=0 // pred_fallthru
    _
  // Predicated region
  $region10: #{infonce_loss.1} parent=0 // pred_check
    _
  $region11: #{infonce_loss.1} parent=0 // pred_check_branch
    %13 = sbr.rel (0) target = $region13
  $region12: #{infonce_loss.1} parent=0 // pred_region
    _
  $region13: #{infonce_loss.1} parent=0 // pred_fallthru
    _
  %p15 = scmp.eq.s32.totalorder 0, 0
  // Predicated region
  $region14: #{infonce_loss.1} parent=0 // pred_check
    %p16 = pneg %p15
  $region15: #{infonce_loss.1} parent=0 // pred_check_branch
    %18 = sbr.rel (%p16) target = $region17
  $region16: #{infonce_loss.1} parent=0 // pred_region
    %v19 = vld [vmem:[%s0] sm:$0x1]
    %20 = vst [vmem:[#allocation2] sm:$0x1] %v19
    %21 = vst [vmem:[#allocation3] sm:$0x1] 1.0
  $region17: #{infonce_loss.1} parent=0 // pred_fallthru
    _
  %v22 = vld [vmem:[%s2] sm:$0xf]
  %v23 = vld [vmem:[%s2 + $0x4] sm:$0xf]
  %v24 = vld [vmem:[%s2 + $0x8] sm:$0xf]
  %v25 = vld [vmem:[%s2 + $0xc] sm:$0xf]
  %v26 = vld [vmem:[%s2 + $0x10] sm:$0xf]
  %v27 = vld [vmem:[%s2 + $0x14] sm:$0xf]
  %v28 = vld [vmem:[%s2 + $0x18] sm:$0xf]
  %v29 = vld [vmem:[%s2 + $0x1c] sm:$0xf]
  %v30 = vld [vmem:[%s2 + $0x20] sm:$0xf]
  %v31 = vld [vmem:[%s2 + $0x24] sm:$0xf]
  %v32 = vld [vmem:[%s2 + $0x28] sm:$0xf]
  %v33 = vld [vmem:[%s2 + $0x2c] sm:$0xf]
  %v34 = vld [vmem:[%s2 + $0x30] sm:$0xf]
  %v35 = vld [vmem:[%s2 + $0x34] sm:$0xf]
  %v36 = vld [vmem:[%s2 + $0x38] sm:$0xf]
  %v37 = vld [vmem:[%s2 + $0x3c] sm:$0xf]
  %v38 = vld [vmem:[%s1] sm:$0xf]
  %v39 = vld [vmem:[%s1 + $0x4] sm:$0xf]
  %v40 = vld [vmem:[%s1 + $0x8] sm:$0xf]
  %v41 = vld [vmem:[%s1 + $0xc] sm:$0xf]
  %v42 = vld [vmem:[%s1 + $0x10] sm:$0xf]
  %v43 = vld [vmem:[%s1 + $0x14] sm:$0xf]
  %v44 = vld [vmem:[%s1 + $0x18] sm:$0xf]
  %v45 = vld [vmem:[%s1 + $0x1c] sm:$0xf]
  %v46 = vld [vmem:[%s1 + $0x20] sm:$0xf]
  %v47 = vld [vmem:[%s1 + $0x24] sm:$0xf]
  %v48 = vld [vmem:[%s1 + $0x28] sm:$0xf]
  %v49 = vld [vmem:[%s1 + $0x2c] sm:$0xf]
  %v50 = vld [vmem:[%s1 + $0x30] sm:$0xf]
  %v51 = vld [vmem:[%s1 + $0x34] sm:$0xf]
  %v52 = vld [vmem:[%s1 + $0x38] sm:$0xf]
  %v53 = vld [vmem:[%s1 + $0x3c] sm:$0xf]
  %v70 = vunpack.c.l.b16 %v22
  %v71 = vunpack.c.l.b16 %v23
  %v72 = vunpack.c.l.b16 %v24
  %v73 = vunpack.c.l.b16 %v25
  %v74 = vunpack.c.l.b16 %v26
  %v75 = vunpack.c.l.b16 %v27
  %v76 = vunpack.c.l.b16 %v28
  %v77 = vunpack.c.l.b16 %v29
  %v78 = vunpack.c.l.b16 %v30
  %v79 = vunpack.c.l.b16 %v31
  %v80 = vunpack.c.l.b16 %v32
  %v81 = vunpack.c.l.b16 %v33
  %v82 = vunpack.c.l.b16 %v34
  %v83 = vunpack.c.l.b16 %v35
  %v84 = vunpack.c.l.b16 %v36
  %v85 = vunpack.c.l.b16 %v37
  %v86 = vpack.c.b16 %v71, %v70
  %v87 = vpack.c.b16 %v73, %v72
  %v88 = vpack.c.b16 %v75, %v74
  %v89 = vpack.c.b16 %v77, %v76
  %v90 = vpack.c.b16 %v79, %v78
  %v91 = vpack.c.b16 %v81, %v80
  %v92 = vpack.c.b16 %v83, %v82
  %v93 = vpack.c.b16 %v85, %v84
  %v118 = vunpack.c.l.b16 %v38
  %v119 = vunpack.c.l.b16 %v39
  %v120 = vunpack.c.l.b16 %v40
  %v121 = vunpack.c.l.b16 %v41
  %v122 = vunpack.c.l.b16 %v42
  %v123 = vunpack.c.l.b16 %v43
  %v124 = vunpack.c.l.b16 %v44
  %v125 = vunpack.c.l.b16 %v45
  %v126 = vunpack.c.l.b16 %v46
  %v127 = vunpack.c.l.b16 %v47
  %v128 = vunpack.c.l.b16 %v48
  %v129 = vunpack.c.l.b16 %v49
  %v130 = vunpack.c.l.b16 %v50
  %v131 = vunpack.c.l.b16 %v51
  %v132 = vunpack.c.l.b16 %v52
  %v133 = vunpack.c.l.b16 %v53
  %v134 = vpack.c.b16 %v119, %v118
  %v135 = vpack.c.b16 %v121, %v120
  %v136 = vpack.c.b16 %v123, %v122
  %v137 = vpack.c.b16 %v125, %v124
  %v138 = vpack.c.b16 %v127, %v126
  %v139 = vpack.c.b16 %v129, %v128
  %v140 = vpack.c.b16 %v131, %v130
  %v141 = vpack.c.b16 %v133, %v132
  %150 = vmatprep.subr.bf16.mxu0 0
  %151 = vmatpush1.bf16.msra.mxu0 %v141
  %152 = vmatprep.subr.bf16.mxu0 0
  %153 = vmatpush1.bf16.msra.mxu0 %v140
  %154 = vmatprep.subr.bf16.mxu0 0
  %155 = vmatpush1.bf16.msra.mxu0 %v139
  %156 = vmatprep.subr.bf16.mxu0 0
  %157 = vmatpush1.bf16.msra.mxu0 %v138
  %158 = vmatprep.subr.bf16.mxu0 0
  %159 = vmatpush1.bf16.msra.mxu0 %v137
  %160 = vmatprep.subr.bf16.mxu0 0
  %161 = vmatpush1.bf16.msra.mxu0 %v136
  %162 = vmatprep.subr.bf16.mxu0 0
  %163 = vmatpush1.bf16.msra.mxu0 %v135
  %164 = vmatprep.subr.bf16.mxu0 0
  %165 = vmatpush1.bf16.msra.mxu0 %v134
  %166 = vmatprep.subr.bf16.mxu0 0
  %167 = vmatpush2.bf16.msra.mxu0 0
  %168 = vmatprep.subr.bf16.mxu0 0
  %169 = vmatpush2.bf16.msra.mxu0 0
  %170 = vmatprep.subr.bf16.mxu0 0
  %171 = vmatpush2.bf16.msra.mxu0 0
  %172 = vmatprep.subr.bf16.mxu0 0
  %173 = vmatpush2.bf16.msra.mxu0 0
  %174 = vmatprep.subr.bf16.mxu0 0
  %175 = vmatpush2.bf16.msra.mxu0 0
  %176 = vmatprep.subr.bf16.mxu0 0
  %177 = vmatpush2.bf16.msra.mxu0 0
  %178 = vmatprep.subr.bf16.mxu0 0
  %179 = vmatpush2.bf16.msra.mxu0 0
  %180 = vmatprep.subr.bf16.mxu0 0
  %181 = vmatpush2.bf16.msra.mxu0 0
  %182 = vmatprep.mubr.bf16.mxu0 0
  %183 = vmatmul.mubr.bf16.gmra.mxu0 %v86
  %v184 = vpop.f32.mrf.mxu0
  %v185 = vadd.f32 0.0, %v184
  %v186 = vpop.f32.mrf.mxu0
  %v187 = vpop.f32.mrf.mxu0
  %v188 = vadd.f32 0.0, %v187
  %v189 = vpop.f32.mrf.mxu0
  %190 = vmatprep.mubr.bf16.mxu0 0
  %191 = vmatmul.mubr.bf16.gmra.mxu0 %v87
  %v192 = vpop.f32.mrf.mxu0
  %v193 = vadd.f32 0.0, %v192
  %v194 = vpop.f32.mrf.mxu0
  %v195 = vpop.f32.mrf.mxu0
  %v196 = vadd.f32 0.0, %v195
  %v197 = vpop.f32.mrf.mxu0
  %198 = vmatprep.mubr.bf16.mxu0 0
  %199 = vmatmul.mubr.bf16.gmra.mxu0 %v88
  %v200 = vpop.f32.mrf.mxu0
  %v201 = vadd.f32 0.0, %v200
  %v202 = vpop.f32.mrf.mxu0
  %v203 = vpop.f32.mrf.mxu0
  %v204 = vadd.f32 0.0, %v203
  %v205 = vpop.f32.mrf.mxu0
  %206 = vmatprep.mubr.bf16.mxu0 0
  %207 = vmatmul.mubr.bf16.gmra.mxu0 %v89
  %v208 = vpop.f32.mrf.mxu0
  %v209 = vadd.f32 0.0, %v208
  %v210 = vpop.f32.mrf.mxu0
  %v211 = vpop.f32.mrf.mxu0
  %v212 = vadd.f32 0.0, %v211
  %v213 = vpop.f32.mrf.mxu0
  %214 = vmatprep.mubr.bf16.mxu0 0
  %215 = vmatmul.mubr.bf16.gmra.mxu0 %v90
  %v216 = vpop.f32.mrf.mxu0
  %v217 = vadd.f32 0.0, %v216
  %v218 = vpop.f32.mrf.mxu0
  %v219 = vpop.f32.mrf.mxu0
  %v220 = vadd.f32 0.0, %v219
  %v221 = vpop.f32.mrf.mxu0
  %222 = vmatprep.mubr.bf16.mxu0 0
  %223 = vmatmul.mubr.bf16.gmra.mxu0 %v91
  %v224 = vpop.f32.mrf.mxu0
  %v225 = vadd.f32 0.0, %v224
  %v226 = vpop.f32.mrf.mxu0
  %v227 = vpop.f32.mrf.mxu0
  %v228 = vadd.f32 0.0, %v227
  %v229 = vpop.f32.mrf.mxu0
  %230 = vmatprep.mubr.bf16.mxu0 0
  %231 = vmatmul.mubr.bf16.gmra.mxu0 %v92
  %v232 = vpop.f32.mrf.mxu0
  %v233 = vadd.f32 0.0, %v232
  %v234 = vpop.f32.mrf.mxu0
  %v235 = vpop.f32.mrf.mxu0
  %v236 = vadd.f32 0.0, %v235
  %v237 = vpop.f32.mrf.mxu0
  %238 = vmatprep.mubr.bf16.mxu0 0
  %239 = vmatmul.mubr.bf16.gmra.mxu0 %v93
  %v240 = vpop.f32.mrf.mxu0
  %v241 = vadd.f32 0.0, %v240
  %v242 = vpop.f32.mrf.mxu0
  %v243 = vpop.f32.mrf.mxu0
  %v244 = vadd.f32 0.0, %v243
  %v245 = vpop.f32.mrf.mxu0
  %246 = vdwg.mxu0
  %p247 = scmp.ne.s32.totalorder 0, 0
  // Predicated region
  $region18: #{infonce_loss.1} parent=0 // pred_check
    %p248 = pneg %p247
  $region19: #{infonce_loss.1} parent=0 // pred_check_branch
    %250 = sbr.rel (%p248) target = $region21
  $region20: #{infonce_loss.1} parent=0 // pred_region
    %v251 = vld [vmem:[#allocation2] sm:$0x1]
    %v252 = vmax.f32 %v185, %v201
    %v253 = vmax.f32 %v188, %v204
    %v254 = vmax.f32 %v193, %v209
    %v255 = vmax.f32 %v196, %v212
    %v256 = vmax.f32 %v252, %v217
    %v257 = vmax.f32 %v253, %v220
    %v258 = vmax.f32 %v254, %v225
    %v259 = vmax.f32 %v255, %v228
    %v260 = vmax.f32 %v256, %v233
    %v261 = vmax.f32 %v257, %v236
    %v262 = vmax.f32 %v258, %v241
    %v263 = vmax.f32 %v259, %v244
    %v264 = vmax.f32 %v260, %v261
    %v265 = vmax.f32 %v262, %v263
    %v266 = vmax.f32 %v264, %v265
    %v267 = vrot.slane %v266, 4
    %v268 = vmax.f32 %v266, %v267
    %v269 = vrot.slane %v268, 2
    %v270 = vmax.f32 %v268, %v269
    %v271 = vrot.slane %v270, 1
    %v272 = vmax.f32 %v270, %v271
    %v273 = vmax.f32 %v251, %v272
    %v274 = vsub.f32 %v251, %v273
    %v275 = vmul.f32 %v274, 1.442695
    %v276 = vpow.pop %v275
    %v277 = vld [vmem:[#allocation3] sm:$0x1]
    %v278 = vmul.f32 %v276, %v277
    %v280 = vlaneseq
    %v281 = vshrl.u32 %v280, 7
    %v282 = vsub.s32 0, %v281
    %v283 = vrot.slane %v273, %v282
    %v285 = vsub.f32 %v185, %v283
    %v286 = vsub.f32 %v188, %v283
    %v287 = vsub.f32 %v193, %v283
    %v288 = vsub.f32 %v196, %v283
    %v289 = vsub.f32 %v201, %v283
    %v290 = vsub.f32 %v204, %v283
    %v291 = vsub.f32 %v209, %v283
    %v292 = vsub.f32 %v212, %v283
    %v293 = vsub.f32 %v217, %v283
    %v294 = vsub.f32 %v220, %v283
    %v295 = vsub.f32 %v225, %v283
    %v296 = vsub.f32 %v228, %v283
    %v297 = vsub.f32 %v233, %v283
    %v298 = vsub.f32 %v236, %v283
    %v299 = vsub.f32 %v241, %v283
    %v300 = vsub.f32 %v244, %v283
    %v301 = vmul.f32 %v285, 1.442695
    %v302 = vpow.pop %v301
    %v303 = vmul.f32 %v286, 1.442695
    %v304 = vpow.pop %v303
    %v305 = vmul.f32 %v287, 1.442695
    %v306 = vpow.pop %v305
    %v307 = vmul.f32 %v288, 1.442695
    %v308 = vpow.pop %v307
    %v309 = vmul.f32 %v289, 1.442695
    %v310 = vpow.pop %v309
    %v311 = vmul.f32 %v290, 1.442695
    %v312 = vpow.pop %v311
    %v313 = vmul.f32 %v291, 1.442695
    %v314 = vpow.pop %v313
    %v315 = vmul.f32 %v292, 1.442695
    %v316 = vpow.pop %v315
    %v317 = vmul.f32 %v293, 1.442695
    %v318 = vpow.pop %v317
    %v319 = vmul.f32 %v294, 1.442695
    %v320 = vpow.pop %v319
    %v321 = vmul.f32 %v295, 1.442695
    %v322 = vpow.pop %v321
    %v323 = vmul.f32 %v296, 1.442695
    %v324 = vpow.pop %v323
    %v325 = vmul.f32 %v297, 1.442695
    %v326 = vpow.pop %v325
    %v327 = vmul.f32 %v298, 1.442695
    %v328 = vpow.pop %v327
    %v329 = vmul.f32 %v299, 1.442695
    %v330 = vpow.pop %v329
    %v331 = vmul.f32 %v300, 1.442695
    %v332 = vpow.pop %v331
    %v333 = vadd.f32 %v302, %v304
    %v334 = vadd.f32 %v333, %v306
    %v335 = vadd.f32 %v334, %v308
    %v336 = vadd.f32 %v335, %v310
    %v337 = vadd.f32 %v336, %v312
    %v338 = vadd.f32 %v337, %v314
    %v339 = vadd.f32 %v338, %v316
    %v340 = vadd.f32 %v339, %v318
    %v341 = vadd.f32 %v340, %v320
    %v342 = vadd.f32 %v341, %v322
    %v343 = vadd.f32 %v342, %v324
    %v344 = vadd.f32 %v343, %v326
    %v345 = vadd.f32 %v344, %v328
    %v346 = vadd.f32 %v345, %v330
    %v347 = vadd.f32 %v346, %v332
    %v348 = vrot.slane %v347, 4
    %v349 = vadd.f32 %v347, %v348
    %v350 = vrot.slane %v349, 2
    %v351 = vadd.f32 %v349, %v350
    %v352 = vrot.slane %v351, 1
    %v353 = vadd.f32 %v351, %v352
    %v354 = vadd.f32 %v278, %v353
    %355 = vst [vmem:[#allocation3] sm:$0x1] %v354
    %356 = vst [vmem:[#allocation2] sm:$0x1] %v273
  $region21: #{infonce_loss.1} parent=0 // pred_fallthru
    _
  // Predicated region
  $region22: #{infonce_loss.1} parent=0 // pred_check
    %p357 = pneg %p15
  $region23: #{infonce_loss.1} parent=0 // pred_check_branch
    %359 = sbr.rel (%p357) target = $region25
  $region24: #{infonce_loss.1} parent=0 // pred_region
    %v360 = vlaneseq
    %v361 = vshrl.u32 %v360, 7
    %v362 = vadd.s32 %v361, 8
    %v363 = vadd.s32 %v361, 16
    %v364 = vadd.s32 %v361, 24
    %v365 = vadd.s32 %v361, 32
    %v366 = vadd.s32 %v361, 40
    %v367 = vadd.s32 %v361, 48
    %v368 = vadd.s32 %v361, 56
    %v369 = vadd.s32 %v361, 64
    %v370 = vadd.s32 %v361, 72
    %v371 = vadd.s32 %v361, 80
    %v372 = vadd.s32 %v361, 88
    %v373 = vadd.s32 %v361, 96
    %v374 = vadd.s32 %v361, 104
    %v375 = vadd.s32 %v361, 112
    %v376 = vadd.s32 %v361, 120
    %vm377 = vcmp.lt.s32.totalorder %v361, 16
    %vm378 = vcmp.lt.s32.totalorder %v362, 16
    %vm379 = vcmp.lt.s32.totalorder %v363, 16
    %vm380 = vcmp.lt.s32.totalorder %v364, 16
    %vm381 = vcmp.lt.s32.totalorder %v365, 16
    %vm382 = vcmp.lt.s32.totalorder %v366, 16
    %vm383 = vcmp.lt.s32.totalorder %v367, 16
    %vm384 = vcmp.lt.s32.totalorder %v368, 16
    %vm385 = vcmp.lt.s32.totalorder %v369, 16
    %vm386 = vcmp.lt.s32.totalorder %v370, 16
    %vm387 = vcmp.lt.s32.totalorder %v371, 16
    %vm388 = vcmp.lt.s32.totalorder %v372, 16
    %vm389 = vcmp.lt.s32.totalorder %v373, 16
    %vm390 = vcmp.lt.s32.totalorder %v374, 16
    %vm391 = vcmp.lt.s32.totalorder %v375, 16
    %vm392 = vcmp.lt.s32.totalorder %v376, 16
    %v393 = vsel %vm377, %v185, -1e+30
    %v394 = vsel %vm378, %v188, -1e+30
    %v395 = vsel %vm379, %v193, -1e+30
    %v396 = vsel %vm380, %v196, -1e+30
    %v397 = vsel %vm381, %v201, -1e+30
    %v398 = vsel %vm382, %v204, -1e+30
    %v399 = vsel %vm383, %v209, -1e+30
    %v400 = vsel %vm384, %v212, -1e+30
    %v401 = vsel %vm385, %v217, -1e+30
    %v402 = vsel %vm386, %v220, -1e+30
    %v403 = vsel %vm387, %v225, -1e+30
    %v404 = vsel %vm388, %v228, -1e+30
    %v405 = vsel %vm389, %v233, -1e+30
    %v406 = vsel %vm390, %v236, -1e+30
    %v407 = vsel %vm391, %v241, -1e+30
    %v408 = vsel %vm392, %v244, -1e+30
    %v409 = vld [vmem:[#allocation2] sm:$0x1]
    %v410 = vmax.f32 %v393, %v397
    %v411 = vmax.f32 %v394, %v398
    %v412 = vmax.f32 %v395, %v399
    %v413 = vmax.f32 %v396, %v400
    %v414 = vmax.f32 %v410, %v401
    %v415 = vmax.f32 %v411, %v402
    %v416 = vmax.f32 %v412, %v403
    %v417 = vmax.f32 %v413, %v404
    %v418 = vmax.f32 %v414, %v405
    %v419 = vmax.f32 %v415, %v406
    %v420 = vmax.f32 %v416, %v407
    %v421 = vmax.f32 %v417, %v408
    %v422 = vmax.f32 %v418, %v419
    %v423 = vmax.f32 %v420, %v421
    %v424 = vmax.f32 %v422, %v423
    %v425 = vrot.slane %v424, 4
    %v426 = vmax.f32 %v424, %v425
    %v427 = vrot.slane %v426, 2
    %v428 = vmax.f32 %v426, %v427
    %v429 = vrot.slane %v428, 1
    %v430 = vmax.f32 %v428, %v429
    %v431 = vmax.f32 %v409, %v430
    %v432 = vsub.f32 %v409, %v431
    %v433 = vmul.f32 %v432, 1.442695
    %v434 = vpow.pop %v433
    %v435 = vld [vmem:[#allocation3] sm:$0x1]
    %v436 = vmul.f32 %v434, %v435
    %v438 = vlaneseq
    %v439 = vshrl.u32 %v438, 7
    %v440 = vsub.s32 0, %v439
    %v441 = vrot.slane %v431, %v440
    %v443 = vsub.f32 %v393, %v441
    %v444 = vsub.f32 %v394, %v441
    %v445 = vsub.f32 %v395, %v441
    %v446 = vsub.f32 %v396, %v441
    %v447 = vsub.f32 %v397, %v441
    %v448 = vsub.f32 %v398, %v441
    %v449 = vsub.f32 %v399, %v441
    %v450 = vsub.f32 %v400, %v441
    %v451 = vsub.f32 %v401, %v441
    %v452 = vsub.f32 %v402, %v441
    %v453 = vsub.f32 %v403, %v441
    %v454 = vsub.f32 %v404, %v441
    %v455 = vsub.f32 %v405, %v441
    %v456 = vsub.f32 %v406, %v441
    %v457 = vsub.f32 %v407, %v441
    %v458 = vsub.f32 %v408, %v441
    %v459 = vmul.f32 %v443, 1.442695
    %v460 = vpow.pop %v459
    %v461 = vmul.f32 %v444, 1.442695
    %v462 = vpow.pop %v461
    %v463 = vmul.f32 %v445, 1.442695
    %v464 = vpow.pop %v463
    %v465 = vmul.f32 %v446, 1.442695
    %v466 = vpow.pop %v465
    %v467 = vmul.f32 %v447, 1.442695
    %v468 = vpow.pop %v467
    %v469 = vmul.f32 %v448, 1.442695
    %v470 = vpow.pop %v469
    %v471 = vmul.f32 %v449, 1.442695
    %v472 = vpow.pop %v471
    %v473 = vmul.f32 %v450, 1.442695
    %v474 = vpow.pop %v473
    %v475 = vmul.f32 %v451, 1.442695
    %v476 = vpow.pop %v475
    %v477 = vmul.f32 %v452, 1.442695
    %v478 = vpow.pop %v477
    %v479 = vmul.f32 %v453, 1.442695
    %v480 = vpow.pop %v479
    %v481 = vmul.f32 %v454, 1.442695
    %v482 = vpow.pop %v481
    %v483 = vmul.f32 %v455, 1.442695
    %v484 = vpow.pop %v483
    %v485 = vmul.f32 %v456, 1.442695
    %v486 = vpow.pop %v485
    %v487 = vmul.f32 %v457, 1.442695
    %v488 = vpow.pop %v487
    %v489 = vmul.f32 %v458, 1.442695
    %v490 = vpow.pop %v489
    %v491 = vadd.f32 %v460, %v462
    %v492 = vadd.f32 %v491, %v464
    %v493 = vadd.f32 %v492, %v466
    %v494 = vadd.f32 %v493, %v468
    %v495 = vadd.f32 %v494, %v470
    %v496 = vadd.f32 %v495, %v472
    %v497 = vadd.f32 %v496, %v474
    %v498 = vadd.f32 %v497, %v476
    %v499 = vadd.f32 %v498, %v478
    %v500 = vadd.f32 %v499, %v480
    %v501 = vadd.f32 %v500, %v482
    %v502 = vadd.f32 %v501, %v484
    %v503 = vadd.f32 %v502, %v486
    %v504 = vadd.f32 %v503, %v488
    %v505 = vadd.f32 %v504, %v490
    %v506 = vrot.slane %v505, 4
    %v507 = vadd.f32 %v505, %v506
    %v508 = vrot.slane %v507, 2
    %v509 = vadd.f32 %v507, %v508
    %v510 = vrot.slane %v509, 1
    %v511 = vadd.f32 %v509, %v510
    %v512 = vadd.f32 %v436, %v511
    %513 = vst [vmem:[#allocation3] sm:$0x1] %v512
    %514 = vst [vmem:[#allocation2] sm:$0x1] %v431
    %v515 = vld [vmem:[#allocation2] sm:$0x1]
    %v516 = vld [vmem:[#allocation3] sm:$0x1]
    %v517 = vlog2.pop %v516
    %v518 = vmul.f32 %v517, 0.6931472
    %v519 = vadd.f32 %v515, %v518
    %v520 = vld [vmem:[%s0] sm:$0x1]
    %v521 = vsub.f32 %v519, %v520
    %522 = vst [vmem:[%s3] sm:$0x1] %v521
  $region25: #{infonce_loss.1} parent=0 // pred_fallthru
    _
  // Predicated region
  $region26: #{infonce_loss.1} parent=0 // pred_check
    _
  $region27: #{infonce_loss.1} parent=0 // pred_check_branch
    %524 = sbr.rel (0) target = $region29
  $region28: #{infonce_loss.1} parent=0 // pred_region
    _
  $region29: #{infonce_loss.1} parent=0 // pred_fallthru
    _
  // Predicated region
  $region30: #{infonce_loss.1} parent=0 // pred_check
    _
  $region31: #{infonce_loss.1} parent=0 // pred_check_branch
    %526 = sbr.rel (0) target = $region33
  $region32: #{infonce_loss.1} parent=0 // pred_region
    _
  $region33: #{infonce_loss.1} parent=0 // pred_fallthru
    _

</llo_original>
